<compile_context>
chip_gen: v5e
topology: v5e:2x2
jax: 0.10.0
libtpu: 0.0.40
codegen_flags: <defaults>
</compile_context>

<pallas_src>
import functools
import math

import jax
import jax.numpy as jnp
from jax import lax
from jax.experimental import pallas as pl
from jax.experimental.pallas import tpu as pltpu


def mha_kernel(x_ref, wqkv_ref, bqkv_ref, wo_ref, bo_ref, o_ref, attn_ref, *, n_head):
    # Per grid step (one batch element):
    #   x_ref   : (S, D)   activations (batch dim squeezed by BlockSpec)
    #   wqkv_ref: (D, 3D)  fused Q|K|V projection weights (compute dtype);
    #                      the 1/sqrt(dh) scale is folded into the Q columns
    #   bqkv_ref: (1, 3D)  fused projection bias (f32)
    #   wo_ref  : (D, D)   output projection weights (compute dtype)
    #   bo_ref  : (1, D)   output projection bias (f32)
    #   o_ref   : (S, D)   output block
    #   attn_ref: (S, D)   f32 VMEM scratch: lane-dense "concat" of head outputs
    S, D = x_ref.shape
    dh = D // n_head
    cdt = wqkv_ref.dtype  # MXU-operand dtype (bf16 in production, f32 for toy check)

    # One wide fused QKV projection: full-depth D contraction, 3D-lane output
    # (replaces 3 * n_head dh-wide matmuls).  f32 accumulation on the MXU.
    x = x_ref[...].astype(cdt)
    qkv = jnp.dot(x, wqkv_ref[...], preferred_element_type=jnp.float32) + bqkv_ref[...]

    # TODO(synk): at production head counts use lax.fori_loop (bounds vreg live
    # ranges) and 128-aligned per-head lane slices; here H=4, dh=8 is tiny.
    for h in range(n_head):
        qh = qkv[:, h * dh:(h + 1) * dh]
        kh = qkv[:, D + h * dh:D + (h + 1) * dh]
        vh = qkv[:, 2 * D + h * dh:2 * D + (h + 1) * dh]

        # Scores contract dh directly via a transposed-RHS dot_general
        # (((1,),(1,)) -> q @ k^T with no XLU transpose of kh).
        s = lax.dot_general(qh.astype(cdt), kh.astype(cdt),
                            (((1,), (1,)), ((), ())),
                            preferred_element_type=jnp.float32)
        # Softmax statistics stay in f32 (v5e VPU/EUP have no bf16 datapath).
        m = jnp.max(s, axis=-1, keepdims=True)
        p = jnp.exp(s - m)
        denom = jnp.sum(p, axis=-1, keepdims=True)

        oh = lax.dot_general(p.astype(cdt), vh.astype(cdt),
                             (((1,), (0,)), ((), ())),
                             preferred_element_type=jnp.float32)
        # Normalize the (S, dh) output instead of the (S, S) probabilities.
        # (approx=True is the production choice — it runs on the otherwise-idle
        #  EUP slot; approx=False keeps the 1e-4 toy-shape reference tolerance.)
        oh = oh * pl.reciprocal(denom, approx=False)

        # Lane-dense write at a static lane offset: builds concat() in VMEM so
        # the output projection below is ONE full-depth matmul.
        attn_ref[:, h * dh:(h + 1) * dh] = oh

    out = jnp.dot(attn_ref[...].astype(cdt), wo_ref[...],
                  preferred_element_type=jnp.float32) + bo_ref[...]
    o_ref[...] = out.astype(o_ref.dtype)


def prepare_mha_params(w_proj, b_proj, w_concat, b_concat, n_head,
                       compute_dtype=jnp.float32):
    """One-time (param-load-time) relayout / scale-fold / dtype cast.

    Linear weights follow the  y = x @ W + b  convention (W = W_torch.T).
    """
    D = w_proj.shape[0]
    dh = D // n_head
    scale = 1.0 / math.sqrt(dh)
    # Fold the 1/sqrt(dh) attention scale into the Q columns in f32, BEFORE any
    # low-precision cast (one deliberate rounding step on the weights).
    col_scale = jnp.concatenate([
        jnp.full((D,), scale, dtype=w_proj.dtype),
        jnp.ones((2 * D,), dtype=w_proj.dtype),
    ])
    w_qkv = (w_proj * col_scale[None, :]).astype(compute_dtype)
    b_qkv = (b_proj * col_scale).reshape(1, 3 * D).astype(jnp.float32)
    w_out = w_concat.astype(compute_dtype)
    b_out = b_concat.reshape(1, D).astype(jnp.float32)
    return w_qkv, b_qkv, w_out, b_out


@functools.partial(jax.jit, static_argnames=("n_head",))
def multi_head_attention(x, w_qkv, b_qkv, w_out, b_out, *, n_head):
    """Self-attention forward. x: [B, S, D] -> [B, S, D]."""
    B, S, D = x.shape
    kernel = functools.partial(mha_kernel, n_head=n_head)

    # Grid over batch, marked "parallel": shardable across v7x's two
    # TensorCores (no cost on v5e/v6e).  Weights/biases use constant
    # index_maps so they are loaded once and stay VMEM-resident.
    grid_spec = pltpu.PrefetchScalarGridSpec(
        num_scalar_prefetch=0,
        grid=(B,),
        in_specs=[
            pl.BlockSpec((None, S, D), lambda b: (b, 0, 0)),   # x (per batch)
            pl.BlockSpec((D, 3 * D), lambda b: (0, 0)),        # wqkv (resident)
            pl.BlockSpec((1, 3 * D), lambda b: (0, 0)),        # bqkv (resident)
            pl.BlockSpec((D, D), lambda b: (0, 0)),            # wo   (resident)
            pl.BlockSpec((1, D), lambda b: (0, 0)),            # bo   (resident)
        ],
        out_specs=pl.BlockSpec((None, S, D), lambda b: (b, 0, 0)),
        scratch_shapes=[pltpu.VMEM((S, D), jnp.float32)],      # lane-dense concat
    )
    return pl.pallas_call(
        kernel,
        out_shape=jax.ShapeDtypeStruct((B, S, D), x.dtype),
        grid_spec=grid_spec,
        compiler_params=pltpu.CompilerParams(
            dimension_semantics=("parallel",)),
    )(x, w_qkv, b_qkv, w_out, b_out)


def mha_reference(x, w_proj, b_proj, w_concat, b_concat, n_head):
    """Pure-JAX f32 reference matching the PyTorch forward (dropout disabled)."""
    B, S, D = x.shape
    d_head = D // n_head
    qkv = x @ w_proj + b_proj                                   # (B, S, 3D)
    q, k, v = jnp.split(qkv, 3, axis=-1)

    def split_heads(t):
        return t.reshape(B, S, n_head, d_head).transpose(0, 2, 1, 3)   # (B, H, S, dh)

    q, k, v = split_heads(q), split_heads(k), split_heads(v)
    scores = jnp.einsum("bhqd,bhkd->bhqk", q, k) / math.sqrt(d_head)
    p = jax.nn.softmax(scores, axis=-1)
    out = jnp.einsum("bhqk,bhkd->bhqd", p, v)                   # (B, H, S, dh)
    out = out.transpose(0, 2, 1, 3).reshape(B, S, D)            # concat()
    return out @ w_concat + b_concat


if __name__ == "__main__":
    # Small shapes consistent with the module.
    B, S, D, H = 2, 8, 32, 4

    key = jax.random.PRNGKey(0)
    k_x, k_wp, k_bp, k_wo, k_bo = jax.random.split(key, 5)

    x = jax.random.normal(k_x, (B, S, D), dtype=jnp.float32)
    # Deterministic param init (shapes mirror nn.Linear(d_model, 3*d_model) etc.)
    w_proj = jax.random.normal(k_wp, (D, 3 * D), dtype=jnp.float32) * 0.05
    b_proj = jax.random.normal(k_bp, (3 * D,), dtype=jnp.float32) * 0.05
    w_concat = jax.random.normal(k_wo, (D, D), dtype=jnp.float32) * 0.05
    b_concat = jax.random.normal(k_bo, (D,), dtype=jnp.float32) * 0.05

    ref = mha_reference(x, w_proj, b_proj, w_concat, b_concat, H)

    # f32 MXU-operand path: tight reference tolerance.
    params_f32 = prepare_mha_params(w_proj, b_proj, w_concat, b_concat, H,
                                    compute_dtype=jnp.float32)
    out = multi_head_attention(x, *params_f32, n_head=H)
    out = jax.block_until_ready(out)
    assert out.shape == (B, S, D)
    assert jnp.allclose(out, ref, atol=1e-4, rtol=1e-4), "f32 path mismatch vs reference"

    # bf16 MXU-operand path (production path on v5e/v6e/v7x: bf16 matmul
    # operands, f32 accumulation, f32 softmax statistics).
    params_bf16 = prepare_mha_params(w_proj, b_proj, w_concat, b_concat, H,
                                     compute_dtype=jnp.bfloat16)
    out_bf16 = multi_head_attention(x, *params_bf16, n_head=H)
    out_bf16 = jax.block_until_ready(out_bf16)
    assert out_bf16.shape == (B, S, D)
    assert jnp.allclose(out_bf16, ref, atol=1e-1, rtol=1e-1), "bf16 path mismatch vs reference"

    print("KERNEL_OK")
</pallas_src>

<mosaic_0001>
module attributes {stable_mosaic.version = 11 : i64} {
  func.func @mha_kernel(%arg0: i32, %arg1: memref<1x8x32xf32, #tpu.memory_space<vmem>>, %arg2: memref<32x96xf32, #tpu.memory_space<vmem>>, %arg3: memref<1x96xf32, #tpu.memory_space<vmem>>, %arg4: memref<32x32xf32, #tpu.memory_space<vmem>>, %arg5: memref<1x32xf32, #tpu.memory_space<vmem>>, %arg6: memref<1x8x32xf32, #tpu.memory_space<vmem>>, %arg7: memref<8x32xf32, #tpu.memory_space<vmem>>) attributes {dimension_semantics = [#tpu.dimension_semantics<parallel>], iteration_bounds = array<i64: 2>, scalar_prefetch = 0 : i64, scratch_operands = 1 : i64, tpu.core_type = #tpu.core_type<tc>, window_params = [{transform_indices = @transform_0, window_bounds = array<i64: 1, 8, 32>}, {pipeline_mode = #tpu.pipeline_mode<synchronous>, transform_indices = @transform_1, window_bounds = array<i64: 32, 96>}, {pipeline_mode = #tpu.pipeline_mode<synchronous>, transform_indices = @transform_2, window_bounds = array<i64: 1, 96>}, {pipeline_mode = #tpu.pipeline_mode<synchronous>, transform_indices = @transform_3, window_bounds = array<i64: 32, 32>}, {pipeline_mode = #tpu.pipeline_mode<synchronous>, transform_indices = @transform_4, window_bounds = array<i64: 1, 32>}, {transform_indices = @transform_5, window_bounds = array<i64: 1, 8, 32>}]} {
    %c0 = arith.constant 0 : index
    %c0_0 = arith.constant 0 : index
    %c0_1 = arith.constant 0 : index
    %0 = vector.load %arg1[%c0, %c0_0, %c0_1] : memref<1x8x32xf32, #tpu.memory_space<vmem>>, vector<1x8x32xf32>
    %1 = vector.shape_cast %0 : vector<1x8x32xf32> to vector<8x32xf32>
    %c0_2 = arith.constant 0 : index
    %c0_3 = arith.constant 0 : index
    %2 = vector.load %arg2[%c0_2, %c0_3] : memref<32x96xf32, #tpu.memory_space<vmem>>, vector<32x96xf32>
    %cst = arith.constant dense<0.000000e+00> : vector<8x96xf32>
    %3 = tpu.matmul %1, %2, %cst {dimension_numbers = #tpu.dot_dimension_numbers<[1], [0], [0], [1], [0, 0, 1, 1], [], []>} : vector<8x32xf32>, vector<32x96xf32>, vector<8x96xf32> -> vector<8x96xf32>
    %c0_4 = arith.constant 0 : index
    %c0_5 = arith.constant 0 : index
    %4 = vector.load %arg3[%c0_4, %c0_5] : memref<1x96xf32, #tpu.memory_space<vmem>>, vector<1x96xf32>
    %5 = vector.broadcast %4 : vector<1x96xf32> to vector<8x96xf32>
    %6 = arith.addf %3, %5 : vector<8x96xf32>
    %7 = vector.extract_strided_slice %6 {offsets = [0, 0], sizes = [8, 8], strides = [1, 1]} : vector<8x96xf32> to vector<8x8xf32>
    %8 = vector.extract_strided_slice %6 {offsets = [0, 32], sizes = [8, 8], strides = [1, 1]} : vector<8x96xf32> to vector<8x8xf32>
    %9 = vector.extract_strided_slice %6 {offsets = [0, 64], sizes = [8, 8], strides = [1, 1]} : vector<8x96xf32> to vector<8x8xf32>
    %cst_6 = arith.constant dense<0.000000e+00> : vector<8x8xf32>
    %10 = tpu.matmul %7, %8, %cst_6 {dimension_numbers = #tpu.dot_dimension_numbers<[1], [1], [0], [0], [0, 0, 1, 0], [], []>} : vector<8x8xf32>, vector<8x8xf32>, vector<8x8xf32> -> vector<8x8xf32>
    %cst_7 = arith.constant dense<0xFF800000> : vector<8xf32>
    %11 = vector.multi_reduction <maximumf>, %10, %cst_7 [1] : vector<8x8xf32> to vector<8xf32>
    %12 = vector.shape_cast %11 : vector<8xf32> to vector<8x1xf32>
    %13 = vector.broadcast %12 : vector<8x1xf32> to vector<8x8xf32>
    %14 = arith.subf %10, %13 : vector<8x8xf32>
    %15 = math.exp %14 : vector<8x8xf32>
    %cst_8 = arith.constant dense<0.000000e+00> : vector<8xf32>
    %16 = vector.multi_reduction <add>, %15, %cst_8 [1] : vector<8x8xf32> to vector<8xf32>
    %17 = vector.shape_cast %16 : vector<8xf32> to vector<8x1xf32>
    %cst_9 = arith.constant dense<0.000000e+00> : vector<8x8xf32>
    %18 = tpu.matmul %15, %9, %cst_9 {dimension_numbers = #tpu.dot_dimension_numbers<[1], [0], [0], [1], [0, 0, 1, 1], [], []>} : vector<8x8xf32>, vector<8x8xf32>, vector<8x8xf32> -> vector<8x8xf32>
    %19 = tpu.reciprocal %17 : vector<8x1xf32> -> vector<8x1xf32>
    %20 = vector.broadcast %19 : vector<8x1xf32> to vector<8x8xf32>
    %21 = arith.mulf %18, %20 : vector<8x8xf32>
    %c0_10 = arith.constant 0 : index
    %c0_11 = arith.constant 0 : index
    %22 = vector.load %arg7[%c0_10, %c0_11] : memref<8x32xf32, #tpu.memory_space<vmem>>, vector<8x8xf32>
    tpu.vector_store %arg7[%c0_10, %c0_11], %21 {strides = array<i32>} : memref<8x32xf32, #tpu.memory_space<vmem>>, vector<8x8xf32>,
    %23 = vector.extract_strided_slice %6 {offsets = [0, 8], sizes = [8, 8], strides = [1, 1]} : vector<8x96xf32> to vector<8x8xf32>
    %24 = vector.extract_strided_slice %6 {offsets = [0, 40], sizes = [8, 8], strides = [1, 1]} : vector<8x96xf32> to vector<8x8xf32>
    %25 = vector.extract_strided_slice %6 {offsets = [0, 72], sizes = [8, 8], strides = [1, 1]} : vector<8x96xf32> to vector<8x8xf32>
    %cst_12 = arith.constant dense<0.000000e+00> : vector<8x8xf32>
    %26 = tpu.matmul %23, %24, %cst_12 {dimension_numbers = #tpu.dot_dimension_numbers<[1], [1], [0], [0], [0, 0, 1, 0], [], []>} : vector<8x8xf32>, vector<8x8xf32>, vector<8x8xf32> -> vector<8x8xf32>
    %cst_13 = arith.constant dense<0xFF800000> : vector<8xf32>
    %27 = vector.multi_reduction <maximumf>, %26, %cst_13 [1] : vector<8x8xf32> to vector<8xf32>
    %28 = vector.shape_cast %27 : vector<8xf32> to vector<8x1xf32>
    %29 = vector.broadcast %28 : vector<8x1xf32> to vector<8x8xf32>
    %30 = arith.subf %26, %29 : vector<8x8xf32>
    %31 = math.exp %30 : vector<8x8xf32>
    %cst_14 = arith.constant dense<0.000000e+00> : vector<8xf32>
    %32 = vector.multi_reduction <add>, %31, %cst_14 [1] : vector<8x8xf32> to vector<8xf32>
    %33 = vector.shape_cast %32 : vector<8xf32> to vector<8x1xf32>
    %cst_15 = arith.constant dense<0.000000e+00> : vector<8x8xf32>
    %34 = tpu.matmul %31, %25, %cst_15 {dimension_numbers = #tpu.dot_dimension_numbers<[1], [0], [0], [1], [0, 0, 1, 1], [], []>} : vector<8x8xf32>, vector<8x8xf32>, vector<8x8xf32> -> vector<8x8xf32>
    %35 = tpu.reciprocal %33 : vector<8x1xf32> -> vector<8x1xf32>
    %36 = vector.broadcast %35 : vector<8x1xf32> to vector<8x8xf32>
    %37 = arith.mulf %34, %36 : vector<8x8xf32>
    %c0_16 = arith.constant 0 : index
    %c8 = arith.constant 8 : index
    %38 = vector.load %arg7[%c0_16, %c8] : memref<8x32xf32, #tpu.memory_space<vmem>>, vector<8x8xf32>
    tpu.vector_store %arg7[%c0_16, %c8], %37 {strides = array<i32>} : memref<8x32xf32, #tpu.memory_space<vmem>>, vector<8x8xf32>,
    %39 = vector.extract_strided_slice %6 {offsets = [0, 16], sizes = [8, 8], strides = [1, 1]} : vector<8x96xf32> to vector<8x8xf32>
    %40 = vector.extract_strided_slice %6 {offsets = [0, 48], sizes = [8, 8], strides = [1, 1]} : vector<8x96xf32> to vector<8x8xf32>
    %41 = vector.extract_strided_slice %6 {offsets = [0, 80], sizes = [8, 8], strides = [1, 1]} : vector<8x96xf32> to vector<8x8xf32>
    %cst_17 = arith.constant dense<0.000000e+00> : vector<8x8xf32>
    %42 = tpu.matmul %39, %40, %cst_17 {dimension_numbers = #tpu.dot_dimension_numbers<[1], [1], [0], [0], [0, 0, 1, 0], [], []>} : vector<8x8xf32>, vector<8x8xf32>, vector<8x8xf32> -> vector<8x8xf32>
    %cst_18 = arith.constant dense<0xFF800000> : vector<8xf32>
    %43 = vector.multi_reduction <maximumf>, %42, %cst_18 [1] : vector<8x8xf32> to vector<8xf32>
    %44 = vector.shape_cast %43 : vector<8xf32> to vector<8x1xf32>
    %45 = vector.broadcast %44 : vector<8x1xf32> to vector<8x8xf32>
    %46 = arith.subf %42, %45 : vector<8x8xf32>
    %47 = math.exp %46 : vector<8x8xf32>
    %cst_19 = arith.constant dense<0.000000e+00> : vector<8xf32>
    %48 = vector.multi_reduction <add>, %47, %cst_19 [1] : vector<8x8xf32> to vector<8xf32>
    %49 = vector.shape_cast %48 : vector<8xf32> to vector<8x1xf32>
    %cst_20 = arith.constant dense<0.000000e+00> : vector<8x8xf32>
    %50 = tpu.matmul %47, %41, %cst_20 {dimension_numbers = #tpu.dot_dimension_numbers<[1], [0], [0], [1], [0, 0, 1, 1], [], []>} : vector<8x8xf32>, vector<8x8xf32>, vector<8x8xf32> -> vector<8x8xf32>
    %51 = tpu.reciprocal %49 : vector<8x1xf32> -> vector<8x1xf32>
    %52 = vector.broadcast %51 : vector<8x1xf32> to vector<8x8xf32>
    %53 = arith.mulf %50, %52 : vector<8x8xf32>
    %c0_21 = arith.constant 0 : index
    %c16 = arith.constant 16 : index
    %54 = vector.load %arg7[%c0_21, %c16] : memref<8x32xf32, #tpu.memory_space<vmem>>, vector<8x8xf32>
    tpu.vector_store %arg7[%c0_21, %c16], %53 {strides = array<i32>} : memref<8x32xf32, #tpu.memory_space<vmem>>, vector<8x8xf32>,
    %55 = vector.extract_strided_slice %6 {offsets = [0, 24], sizes = [8, 8], strides = [1, 1]} : vector<8x96xf32> to vector<8x8xf32>
    %56 = vector.extract_strided_slice %6 {offsets = [0, 56], sizes = [8, 8], strides = [1, 1]} : vector<8x96xf32> to vector<8x8xf32>
    %57 = vector.extract_strided_slice %6 {offsets = [0, 88], sizes = [8, 8], strides = [1, 1]} : vector<8x96xf32> to vector<8x8xf32>
    %cst_22 = arith.constant dense<0.000000e+00> : vector<8x8xf32>
    %58 = tpu.matmul %55, %56, %cst_22 {dimension_numbers = #tpu.dot_dimension_numbers<[1], [1], [0], [0], [0, 0, 1, 0], [], []>} : vector<8x8xf32>, vector<8x8xf32>, vector<8x8xf32> -> vector<8x8xf32>
    %cst_23 = arith.constant dense<0xFF800000> : vector<8xf32>
    %59 = vector.multi_reduction <maximumf>, %58, %cst_23 [1] : vector<8x8xf32> to vector<8xf32>
    %60 = vector.shape_cast %59 : vector<8xf32> to vector<8x1xf32>
    %61 = vector.broadcast %60 : vector<8x1xf32> to vector<8x8xf32>
    %62 = arith.subf %58, %61 : vector<8x8xf32>
    %63 = math.exp %62 : vector<8x8xf32>
    %cst_24 = arith.constant dense<0.000000e+00> : vector<8xf32>
    %64 = vector.multi_reduction <add>, %63, %cst_24 [1] : vector<8x8xf32> to vector<8xf32>
    %65 = vector.shape_cast %64 : vector<8xf32> to vector<8x1xf32>
    %cst_25 = arith.constant dense<0.000000e+00> : vector<8x8xf32>
    %66 = tpu.matmul %63, %57, %cst_25 {dimension_numbers = #tpu.dot_dimension_numbers<[1], [0], [0], [1], [0, 0, 1, 1], [], []>} : vector<8x8xf32>, vector<8x8xf32>, vector<8x8xf32> -> vector<8x8xf32>
    %67 = tpu.reciprocal %65 : vector<8x1xf32> -> vector<8x1xf32>
    %68 = vector.broadcast %67 : vector<8x1xf32> to vector<8x8xf32>
    %69 = arith.mulf %66, %68 : vector<8x8xf32>
    %c0_26 = arith.constant 0 : index
    %c24 = arith.constant 24 : index
    %70 = vector.load %arg7[%c0_26, %c24] : memref<8x32xf32, #tpu.memory_space<vmem>>, vector<8x8xf32>
    tpu.vector_store %arg7[%c0_26, %c24], %69 {strides = array<i32>} : memref<8x32xf32, #tpu.memory_space<vmem>>, vector<8x8xf32>,
    %c0_27 = arith.constant 0 : index
    %c0_28 = arith.constant 0 : index
    %71 = vector.load %arg7[%c0_27, %c0_28] : memref<8x32xf32, #tpu.memory_space<vmem>>, vector<8x32xf32>
    %c0_29 = arith.constant 0 : index
    %c0_30 = arith.constant 0 : index
    %72 = vector.load %arg4[%c0_29, %c0_30] : memref<32x32xf32, #tpu.memory_space<vmem>>, vector<32x32xf32>
    %cst_31 = arith.constant dense<0.000000e+00> : vector<8x32xf32>
    %73 = tpu.matmul %71, %72, %cst_31 {dimension_numbers = #tpu.dot_dimension_numbers<[1], [0], [0], [1], [0, 0, 1, 1], [], []>} : vector<8x32xf32>, vector<32x32xf32>, vector<8x32xf32> -> vector<8x32xf32>
    %c0_32 = arith.constant 0 : index
    %c0_33 = arith.constant 0 : index
    %74 = vector.load %arg5[%c0_32, %c0_33] : memref<1x32xf32, #tpu.memory_space<vmem>>, vector<1x32xf32>
    %75 = vector.broadcast %74 : vector<1x32xf32> to vector<8x32xf32>
    %76 = arith.addf %73, %75 : vector<8x32xf32>
    %c0_34 = arith.constant 0 : index
    %c0_35 = arith.constant 0 : index
    %c0_36 = arith.constant 0 : index
    %77 = vector.load %arg6[%c0_34, %c0_35, %c0_36] : memref<1x8x32xf32, #tpu.memory_space<vmem>>, vector<1x8x32xf32>
    %78 = vector.shape_cast %77 : vector<1x8x32xf32> to vector<8x32xf32>
    %79 = vector.shape_cast %76 : vector<8x32xf32> to vector<1x8x32xf32>
    tpu.vector_store %arg6[%c0_34, %c0_35, %c0_36], %79 {strides = array<i32>} : memref<1x8x32xf32, #tpu.memory_space<vmem>>, vector<1x8x32xf32>,
    return
  }
  func.func @transform_0(%arg0: i32) -> (i32, i32, i32) {
    %c0_i32 = arith.constant 0 : i32
    %c0_i32_0 = arith.constant 0 : i32
    %c0_i32_1 = arith.constant 0 : i32
    return %arg0, %c0_i32, %c0_i32_0 : i32, i32, i32
  }
  func.func @transform_1(%arg0: i32) -> (i32, i32) {
    %c0_i32 = arith.constant 0 : i32
    %c0_i32_0 = arith.constant 0 : i32
    %c0_i32_1 = arith.constant 0 : i32
    return %c0_i32, %c0_i32_0 : i32, i32
  }
  func.func @transform_2(%arg0: i32) -> (i32, i32) {
    %c0_i32 = arith.constant 0 : i32
    %c0_i32_0 = arith.constant 0 : i32
    %c0_i32_1 = arith.constant 0 : i32
    return %c0_i32, %c0_i32_0 : i32, i32
  }
  func.func @transform_3(%arg0: i32) -> (i32, i32) {
    %c0_i32 = arith.constant 0 : i32
    %c0_i32_0 = arith.constant 0 : i32
    %c0_i32_1 = arith.constant 0 : i32
    return %c0_i32, %c0_i32_0 : i32, i32
  }
  func.func @transform_4(%arg0: i32) -> (i32, i32) {
    %c0_i32 = arith.constant 0 : i32
    %c0_i32_0 = arith.constant 0 : i32
    %c0_i32_1 = arith.constant 0 : i32
    return %c0_i32, %c0_i32_0 : i32, i32
  }
  func.func @transform_5(%arg0: i32) -> (i32, i32, i32) {
    %c0_i32 = arith.constant 0 : i32
    %c0_i32_0 = arith.constant 0 : i32
    %c0_i32_1 = arith.constant 0 : i32
    return %arg0, %c0_i32, %c0_i32_0 : i32, i32, i32
  }
}

</mosaic_0001>

<llo_original>
// kernel: multi_head_attention.1
$region0: #{multi_head_attention.1}
  #allocation0 [shape = 'u32[]', space=smem, size = 0x4, offset = 0x4, fixed_abs, tag = 'smem constant byte address 0x4 - core index']
  #allocation1 [shape = 'u32[72,128]{1,0:T(1,128)}', space=vmem, size = 0x9000, scoped, tag = 'internal scratch']
  #allocation2 [shape = 'f32[8,32]{1,0:T(8,128)}', space=vmem, size = 0x1000, scoped, tag = 'scratch operand']
  %s0 = inlined_call_operand.hbm [shape: f32[2,8,32], index: 0, kind: input, shape index: {}]
  %s1 = inlined_call_operand.hbm [shape: f32[32,96], index: 1, kind: input, shape index: {}]
  %s2 = inlined_call_operand.vmem [shape: f32[1,96], index: 2, kind: input, shape index: {}]
  %s3 = inlined_call_operand.hbm [shape: f32[32,32], index: 3, kind: input, shape index: {}]
  %s4 = inlined_call_operand.vmem [shape: f32[1,32], index: 4, kind: input, shape index: {}]
  %s5 = inlined_call_operand.hbm [shape: f32[2,8,32], index: 5, kind: output, shape index: {}]
  %s6 = sld [smem:[#allocation0]]
  $region65: #{multi_head_attention.1} parent=0
    _
  %s8 = ssub.s32 1, %s6
  %s9 = scalar_select 0, %s8, %s6
  $region1: #{multi_head_attention.1} parent=0
    #allocation3 [shape = 'u8[8192]{0}', space=vmem, size = 0x2000, scoped, tag = 'input window, operand 0']
    #allocation4 [shape = 's32[2]{0}', space=sflag, size = 0x8, scoped, tag = 'scoped memory for multi_head_attention.1']
    #allocation5 [shape = 's32[2]{0}', space=sflag, size = 0x8, scoped, tag = 'scoped memory for multi_head_attention.1']
    #allocation6 [shape = 'u8[16384]{0}', space=vmem, size = 0x4000, scoped, tag = 'input window, operand 1, single buffered']
    #allocation7 [shape = 's32[1]{0}', space=sflag, size = 0x4, scoped, tag = 'scoped memory for multi_head_attention.1']
    #allocation8 [shape = 'u8[16384]{0}', space=vmem, size = 0x4000, scoped, tag = 'input window, operand 3, single buffered']
    #allocation9 [shape = 'u8[8192]{0}', space=vmem, size = 0x2000, scoped, tag = 'output window, operand 0']
    %10 = vsyncpa [#allocation4], 0
    %s11 = scalar_lea.sflag [#allocation4], 1
    %12 = vsyncpa %s11, 0
    %13 = vsyncpa [#allocation7], 0
    %14 = vsyncpa [#allocation5], 0
    %s15 = scalar_lea.sflag [#allocation5], 1
    %16 = vsyncpa %s15, 0
    loop: start=0, step=1, limit=4
    $region2: #{multi_head_attention.1} parent=1 // loop_pre_header
      _
    $region3: #{multi_head_attention.1} parent=1 // loop_header
      %s18 = sphi 0, %s22
      %p19 = scmp.ge.s32.totalorder %s18, 4
      %s28 = sphi 0, %s30
      %s31 = sphi 0, %s28
      %s32 = sphi 0, %s31
      %s48 = sphi 0, %s32
      %s52 = sphi 0, %s52
      %s54 = sphi 0, %s52
      %s55 = sphi 0, %s54
      %s69 = sphi 0, %s55
      %s73 = sphi 0, %s73
      %s75 = sphi 0, %s73
      %s76 = sphi 0, %s75
      %s90 = sphi 0, %s76
      %s94 = sphi 0, %s94
      %s96 = sphi 0, %s94
      %s97 = sphi 0, %s96
      %s111 = sphi 0, %s97
      %s115 = sphi 0, %s115
      %s117 = sphi 0, %s115
      %s118 = sphi 0, %s117
      %s132 = sphi 0, %s118
      %s138 = sphi 0, %s140
      %s141 = sphi 0, %s138
      %s142 = sphi 0, %s141
      %s158 = sphi 0, %s142
    $region4: #{multi_head_attention.1} parent=1 // loop_header_branch
      %21 = sbr.rel (%p19) target = $region8
    $region5: #{multi_head_attention.1} parent=1 // loop_body
      %s23 = ssub.s32 %s18, 1
      %s24 = ssub.s32 %s18, 2
      %s25 = sadd.s32 %s18, 1
      %s26 = ssub.s32 %s18, %s25
      %p27 = scmp.eq.s32.totalorder %s26, 0
      %s29 = sadd.s32 %s28, 1
      %s30 = scalar_select %p27, %s28, %s29
      %p33 = pneg %p27
      %p34 = scmp.eq.s32.totalorder %s18, 1
      %p35 = por %p33, %p34
      %p36 = scmp.ne.s32.totalorder %s28, %s31
      %p37 = scmp.eq.s32.totalorder %s18, 0
      %p38 = por %p36, %p37
      %p39 = scmp.ne.s32.totalorder %s28, %s31
      %p40 = scmp.eq.s32.totalorder %s23, 1
      %p41 = por %p39, %p40
      %p42 = scmp.ne.s32.totalorder %s31, %s32
      %p43 = scmp.eq.s32.totalorder %s23, 0
      %p44 = por %p42, %p43
      %p45 = scmp.ne.s32.totalorder %s31, %s32
      %p46 = scmp.eq.s32.totalorder %s24, 1
      %p47 = por %p45, %p46
      %p49 = scmp.ne.s32.totalorder %s32, %s48
      %p50 = scmp.eq.s32.totalorder %s24, 0
      %p51 = por %p49, %p50
      %s53 = sadd.s32 %s52, 1
      %p56 = scmp.eq.s32.totalorder %s18, 1
      %p57 = scmp.ne.s32.totalorder %s52, %s54
      %p58 = scmp.eq.s32.totalorder %s18, 0
      %p59 = por %p57, %p58
      %p60 = scmp.ne.s32.totalorder %s52, %s54
      %p61 = scmp.eq.s32.totalorder %s23, 1
      %p62 = por %p60, %p61
      %p63 = scmp.ne.s32.totalorder %s54, %s55
      %p64 = scmp.eq.s32.totalorder %s23, 0
      %p65 = por %p63, %p64
      %p66 = scmp.ne.s32.totalorder %s54, %s55
      %p67 = scmp.eq.s32.totalorder %s24, 1
      %p68 = por %p66, %p67
      %p70 = scmp.ne.s32.totalorder %s55, %s69
      %p71 = scmp.eq.s32.totalorder %s24, 0
      %p72 = por %p70, %p71
      %s74 = sadd.s32 %s73, 1
      %p77 = scmp.eq.s32.totalorder %s18, 1
      %p78 = scmp.ne.s32.totalorder %s73, %s75
      %p79 = scmp.eq.s32.totalorder %s18, 0
      %p80 = por %p78, %p79
      %p81 = scmp.ne.s32.totalorder %s73, %s75
      %p82 = scmp.eq.s32.totalorder %s23, 1
      %p83 = por %p81, %p82
      %p84 = scmp.ne.s32.totalorder %s75, %s76
      %p85 = scmp.eq.s32.totalorder %s23, 0
      %p86 = por %p84, %p85
      %p87 = scmp.ne.s32.totalorder %s75, %s76
      %p88 = scmp.eq.s32.totalorder %s24, 1
      %p89 = por %p87, %p88
      %p91 = scmp.ne.s32.totalorder %s76, %s90
      %p92 = scmp.eq.s32.totalorder %s24, 0
      %p93 = por %p91, %p92
      %s95 = sadd.s32 %s94, 1
      %p98 = scmp.eq.s32.totalorder %s18, 1
      %p99 = scmp.ne.s32.totalorder %s94, %s96
      %p100 = scmp.eq.s32.totalorder %s18, 0
      %p101 = por %p99, %p100
      %p102 = scmp.ne.s32.totalorder %s94, %s96
      %p103 = scmp.eq.s32.totalorder %s23, 1
      %p104 = por %p102, %p103
      %p105 = scmp.ne.s32.totalorder %s96, %s97
      %p106 = scmp.eq.s32.totalorder %s23, 0
      %p107 = por %p105, %p106
      %p108 = scmp.ne.s32.totalorder %s96, %s97
      %p109 = scmp.eq.s32.totalorder %s24, 1
      %p110 = por %p108, %p109
      %p112 = scmp.ne.s32.totalorder %s97, %s111
      %p113 = scmp.eq.s32.totalorder %s24, 0
      %p114 = por %p112, %p113
      %s116 = sadd.s32 %s115, 1
      %p119 = scmp.eq.s32.totalorder %s18, 1
      %p120 = scmp.ne.s32.totalorder %s115, %s117
      %p121 = scmp.eq.s32.totalorder %s18, 0
      %p122 = por %p120, %p121
      %p123 = scmp.ne.s32.totalorder %s115, %s117
      %p124 = scmp.eq.s32.totalorder %s23, 1
      %p125 = por %p123, %p124
      %p126 = scmp.ne.s32.totalorder %s117, %s118
      %p127 = scmp.eq.s32.totalorder %s23, 0
      %p128 = por %p126, %p127
      %p129 = scmp.ne.s32.totalorder %s117, %s118
      %p130 = scmp.eq.s32.totalorder %s24, 1
      %p131 = por %p129, %p130
      %p133 = scmp.ne.s32.totalorder %s118, %s132
      %p134 = scmp.eq.s32.totalorder %s24, 0
      %p135 = por %p133, %p134
      %s136 = ssub.s32 %s18, %s25
      %p137 = scmp.eq.s32.totalorder %s136, 0
      %s139 = sadd.s32 %s138, 1
      %s140 = scalar_select %p137, %s138, %s139
      %p143 = pneg %p137
      %p144 = scmp.eq.s32.totalorder %s18, 1
      %p145 = por %p143, %p144
      %p146 = scmp.ne.s32.totalorder %s138, %s141
      %p147 = scmp.eq.s32.totalorder %s18, 0
      %p148 = por %p146, %p147
      %p149 = scmp.ne.s32.totalorder %s138, %s141
      %p150 = scmp.eq.s32.totalorder %s23, 1
      %p151 = por %p149, %p150
      %p152 = scmp.ne.s32.totalorder %s141, %s142
      %p153 = scmp.eq.s32.totalorder %s23, 0
      %p154 = por %p152, %p153
      %p155 = scmp.ne.s32.totalorder %s141, %s142
      %p156 = scmp.eq.s32.totalorder %s24, 1
      %p157 = por %p155, %p156
      %p159 = scmp.ne.s32.totalorder %s142, %s158
      %p160 = scmp.eq.s32.totalorder %s24, 0
      %p161 = por %p159, %p160
      %p162 = scmp.le.s32.totalorder 1, %s18
      %p163 = scmp.lt.s32.totalorder %s18, 3
      %p164 = pnand %p162, %p163
      %p165 = pneg %p164
      // Predicated region
      $region9: #{multi_head_attention.1} parent=5 // pred_check
        _
      $region10: #{multi_head_attention.1} parent=5 // pred_check_branch
        %167 = sbr.rel (%p164) target = $region12
      $region11: #{multi_head_attention.1} parent=5 // pred_region
        %s168 = ssub.s32 %s18, 1
        // Predicated region
        $region13: #{multi_head_attention.1} parent=11 // pred_check
          %p169 = pneg %p65
        $region14: #{multi_head_attention.1} parent=11 // pred_check_branch
          %171 = sbr.rel (%p169) target = $region16
        $region15: #{multi_head_attention.1} parent=11 // pred_region
          %173 = vsyncadd [#allocation7], 0
          %s174 = sshll.u32 %s1, 4
          %s175 = int_to_ptr.hbm [resolvable:$true] %s174
          %s176 = sshll.u32 [#allocation6], 4
          %s177 = int_to_ptr.vmem [resolvable:$true] %s176
          %182 = dma.hbm_to_vmem [thread:$0]  %s175, 512, %s177, [#allocation7], 128, 128, 8
        $region16: #{multi_head_attention.1} parent=11 // pred_fallthru
          _
        // Predicated region
        $region17: #{multi_head_attention.1} parent=11 // pred_check
          %p183 = pneg %p86
        $region18: #{multi_head_attention.1} parent=11 // pred_check_branch
          %185 = sbr.rel (%p183) target = $region20
        $region19: #{multi_head_attention.1} parent=11 // pred_region
          _
        $region20: #{multi_head_attention.1} parent=11 // pred_fallthru
          _
        // Predicated region
        $region21: #{multi_head_attention.1} parent=11 // pred_check
          %p186 = pneg %p107
        $region22: #{multi_head_attention.1} parent=11 // pred_check_branch
          %188 = sbr.rel (%p186) target = $region24
        $region23: #{multi_head_attention.1} parent=11 // pred_region
          %190 = vsyncadd [#allocation7], 0
          %s191 = sshll.u32 %s3, 4
          %s192 = int_to_ptr.hbm [resolvable:$true] %s191
          %s193 = sshll.u32 [#allocation8], 4
          %s194 = int_to_ptr.vmem [resolvable:$true] %s193
          %199 = dma.hbm_to_vmem [thread:$0]  %s192, 512, %s194, [#allocation7], 128, 128, 8
        $region24: #{multi_head_attention.1} parent=11 // pred_fallthru
          _
        // Predicated region
        $region25: #{multi_head_attention.1} parent=11 // pred_check
          %p200 = pneg %p128
        $region26: #{multi_head_attention.1} parent=11 // pred_check_branch
          %202 = sbr.rel (%p200) target = $region28
        $region27: #{multi_head_attention.1} parent=11 // pred_region
          _
        $region28: #{multi_head_attention.1} parent=11 // pred_fallthru
          _
      $region12: #{multi_head_attention.1} parent=5 // pred_fallthru
        _
      %p203 = scmp.lt.s32.totalorder %s18, 2
      // Predicated region
      $region29: #{multi_head_attention.1} parent=5 // pred_check
        %p204 = pneg %p203
      $region30: #{multi_head_attention.1} parent=5 // pred_check_branch
        %206 = sbr.rel (%p204) target = $region32
      $region31: #{multi_head_attention.1} parent=5 // pred_region
        // Predicated region
        $region33: #{multi_head_attention.1} parent=31 // pred_check
          %p207 = pneg %p38
        $region34: #{multi_head_attention.1} parent=31 // pred_check_branch
          %209 = sbr.rel (%p207) target = $region36
        $region35: #{multi_head_attention.1} parent=31 // pred_region
          %s210 = sand.u32 %s28, 1
          %s211 = scalar_lea.sflag [#allocation4], %s210
          %s212 = sand.u32 %s28, 1
          %s213 = smul.addr %s212, 8
          %s214 = scalar_lea.vmem [#allocation3], %s213
          %216 = vsyncadd %s211, 0
          %s217 = smul.addr %s18, 8
          %s218 = scalar_lea.hbm %s0, %s217
          %s220 = sshll.u32 %s218, 4
          %s221 = int_to_ptr.hbm [resolvable:$true] %s220
          %s222 = sshll.u32 %s214, 4
          %s223 = int_to_ptr.vmem [resolvable:$true] %s222
          %225 = dma.hbm_to_vmem [thread:$0]  %s221, 128, %s223, %s211
        $region36: #{multi_head_attention.1} parent=31 // pred_fallthru
          _
      $region32: #{multi_head_attention.1} parent=5 // pred_fallthru
        _
      %p226 = scmp.le.s32.totalorder 1, %s18
      %p227 = scmp.lt.s32.totalorder %s18, 3
      %p228 = pnand %p226, %p227
      %p229 = pneg %p228
      // Predicated region
      $region37: #{multi_head_attention.1} parent=5 // pred_check
        _
      $region38: #{multi_head_attention.1} parent=5 // pred_check_branch
        %231 = sbr.rel (%p228) target = $region40
      $region39: #{multi_head_attention.1} parent=5 // pred_region
        %s232 = ssub.s32 %s18, 1
        %s233 = sand.u32 %s31, 1
        %s234 = scalar_lea.sflag [#allocation4], %s233
        %s235 = sand.u32 %s31, 1
        %s236 = smul.addr %s235, 8
        %s237 = scalar_lea.vmem [#allocation3], %s236
        // Predicated region
        $region41: #{multi_head_attention.1} parent=39 // pred_check
          %p238 = pneg %p44
        $region42: #{multi_head_attention.1} parent=39 // pred_check_branch
          %240 = sbr.rel (%p238) target = $region44
        $region43: #{multi_head_attention.1} parent=39 // pred_region
          %242 = dma.done %s234, 128
        $region44: #{multi_head_attention.1} parent=39 // pred_fallthru
          _
        // Predicated region
        $region45: #{multi_head_attention.1} parent=39 // pred_check
          %p243 = pneg %p65
        $region46: #{multi_head_attention.1} parent=39 // pred_check_branch
          %245 = sbr.rel (%p243) target = $region48
        $region47: #{multi_head_attention.1} parent=39 // pred_region
          %247 = dma.done [#allocation7], 512
        $region48: #{multi_head_attention.1} parent=39 // pred_fallthru
          _
        // Predicated region
        $region49: #{multi_head_attention.1} parent=39 // pred_check
          %p248 = pneg %p107
        $region50: #{multi_head_attention.1} parent=39 // pred_check_branch
          %250 = sbr.rel (%p248) target = $region52
        $region51: #{multi_head_attention.1} parent=39 // pred_region
          %252 = dma.done [#allocation7], 512
        $region52: #{multi_head_attention.1} parent=39 // pred_fallthru
          _
        %s253 = sand.u32 %s31, 1
        %s254 = scalar_lea.sflag [#allocation4], %s253
        %s255 = sand.u32 %s31, 1
        %s256 = smul.addr %s255, 8
        %s257 = scalar_lea.vmem [#allocation3], %s256
        %p258 = pneg %p44
        %p259 = pneg %p41
        %p260 = pneg %p65
        %p261 = pneg %p62
        %p262 = pneg %p86
        %p263 = pneg %p83
        %p264 = pneg %p107
        %p265 = pneg %p104
        %p266 = pneg %p128
        %p267 = pneg %p125
        %p268 = pneg %p154
        %p269 = pneg %p151
        %s270 = sand.u32 %s141, 1
        %s271 = scalar_lea.sflag [#allocation5], %s270
        %s272 = sand.u32 %s141, 1
        %s273 = smul.addr %s272, 8
        %s274 = scalar_lea.vmem [#allocation9], %s273
        %v275 = vld [vmem:[%s237] sm:$0xff]
        %v276 = vld [vmem:[#allocation6] sm:$0xff]
        %v277 = vld [vmem:[#allocation6 + $0x8] sm:$0xff]
        %v278 = vld [vmem:[#allocation6 + $0x10] sm:$0xff]
        %v279 = vld [vmem:[#allocation6 + $0x18] sm:$0xff]
        %v280 = vld [vmem:[%s2] sm:$0x1]
        %v282 = vperm.slane %v280, 0
        %vm284 = vcmask 261120
        %v286 = vsel %vm284, %v275, 0
        %288 = vmatpush.msra.mxu0 0.0
        %289 = vmatpush.msra.mxu0 0.0
        %290 = vmatpush.msra.mxu0 0.0
        %291 = vmatpush.msra.mxu0 0.0
        %292 = vmatpush.msra.mxu0 0.0
        %293 = vmatpush.msra.mxu0 0.0
        %294 = vmatpush.msra.mxu0 0.0
        %295 = vmatpush.msra.mxu0 0.0
        %296 = vmatpush.msra.mxu0 0.0
        %297 = vmatpush.msra.mxu0 0.0
        %298 = vmatpush.msra.mxu0 0.0
        %299 = vmatpush.msra.mxu0 0.0
        %300 = vmatpush.msra.mxu0 %v279
        %301 = vmatpush.msra.mxu0 %v278
        %302 = vmatpush.msra.mxu0 %v277
        %303 = vmatpush.msra.mxu0 %v276
        %304 = vmatmul.f32.gmra.mxu0 %v286
        %v305 = vpop.f32.mrf.mxu0
        %v306 = vadd.f32 %v282, %v305
        %307 = vdwg.mxu0
        %309 = vrot.lane.b32.xlu0 %v306, 96
        %v310 = vpop.permute.xlu0 %309
        %vm311 = vcmask 64512
        %v312 = vsel %vm311, %v306, 0
        %v314 = vsel %vm311, %v310, 0
        %316 = vmatpush.xpose.msra.mxu0 0.0
        %317 = vmatpush.xpose.msra.mxu0 0.0
        %318 = vmatpush.xpose.msra.mxu0 0.0
        %319 = vmatpush.xpose.msra.mxu0 0.0
        %320 = vmatpush.xpose.msra.mxu0 0.0
        %321 = vmatpush.xpose.msra.mxu0 0.0
        %322 = vmatpush.xpose.msra.mxu0 0.0
        %323 = vmatpush.xpose.msra.mxu0 0.0
        %324 = vmatpush.xpose.msra.mxu0 0.0
        %325 = vmatpush.xpose.msra.mxu0 0.0
        %326 = vmatpush.xpose.msra.mxu0 0.0
        %327 = vmatpush.xpose.msra.mxu0 0.0
        %328 = vmatpush.xpose.msra.mxu0 0.0
        %329 = vmatpush.xpose.msra.mxu0 0.0
        %330 = vmatpush.xpose.msra.mxu0 0.0
        %331 = vmatpush.xpose.msra.mxu0 %v314
        %332 = vmatmul.f32.gmra.mxu0 %v312
        %v333 = vpop.f32.mrf.mxu0
        %v334 = vadd.f32 0.0, %v333
        %335 = vdwg.mxu0
        %v336 = vsel %vm311, %v334, -inf
        %337 = vmax.xlane.f32.xlu0 %v336
        %v338 = vpop.xlane.xlu0 %337
        %v339 = vsub.f32 %v334, %v338
        %v340 = vmul.f32 %v339, 1.442695
        %v341 = vpow.pop %v340
        %v342 = vsel %vm311, %v341, 0.0
        %343 = vadd.xlane.f32.xlu0 %v342
        %v344 = vpop.xlane.xlu0 %343
        %345 = vrot.lane.b32.xlu0 %v306, 64
        %v346 = vpop.permute.xlu0 %345
        %v349 = vsel %vm311, %v341, 0
        %351 = vmatpush.msra.mxu0 0.0
        %352 = vmatpush.msra.mxu0 0.0
        %353 = vmatpush.msra.mxu0 0.0
        %354 = vmatpush.msra.mxu0 0.0
        %355 = vmatpush.msra.mxu0 0.0
        %356 = vmatpush.msra.mxu0 0.0
        %357 = vmatpush.msra.mxu0 0.0
        %358 = vmatpush.msra.mxu0 0.0
        %359 = vmatpush.msra.mxu0 0.0
        %360 = vmatpush.msra.mxu0 0.0
        %361 = vmatpush.msra.mxu0 0.0
        %362 = vmatpush.msra.mxu0 0.0
        %363 = vmatpush.msra.mxu0 0.0
        %364 = vmatpush.msra.mxu0 0.0
        %365 = vmatpush.msra.mxu0 0.0
        %366 = vmatpush.msra.mxu0 %v346
        %367 = vmatmul.f32.gmra.mxu0 %v349
        %v368 = vpop.f32.mrf.mxu0
        %v369 = vadd.f32 0.0, %v368
        %370 = vdwg.mxu0
        %v371 = vrcp.pop %v344
        %v372 = vmul.f32 %v344, %v371
        %v373 = vsub.f32 1.0, %v372
        %v374 = vmul.f32 %v371, %v373
        %v375 = vadd.f32 %v371, %v374
        %vm376 = vweird.f32 %v344
        %vm377 = vweird.f32 %v371
        %vm378 = vmor %vm376, %vm377
        %v379 = vsel %vm378, %v371, %v375
        %v380 = vand.u32 2147483647, %v344
        %vm381 = vcmp.eq.f32.partialorder %v380, 8.507059e+37
        %v382 = vand.u32 %v344, 2147483648
        %v383 = vor.u32 1.1754944e-38, %v382
        %v384 = vsel %vm381, %v383, %v379
        %v385 = vmul.f32 %v369, %v384
        %386 = vst.msk [vmem:[#allocation2] sm:$0xff] %vm311, %v385
        %387 = vrot.lane.b32.xlu0 %v306, 120
        %v388 = vpop.permute.xlu0 %387
        %389 = vrot.lane.b32.xlu0 %v306, 88
        %v390 = vpop.permute.xlu0 %389
        %v391 = vsel %vm311, %v388, 0
        %v393 = vsel %vm311, %v390, 0
        %395 = vmatpush.xpose.msra.mxu0 0.0
        %396 = vmatpush.xpose.msra.mxu0 0.0
        %397 = vmatpush.xpose.msra.mxu0 0.0
        %398 = vmatpush.xpose.msra.mxu0 0.0
        %399 = vmatpush.xpose.msra.mxu0 0.0
        %400 = vmatpush.xpose.msra.mxu0 0.0
        %401 = vmatpush.xpose.msra.mxu0 0.0
        %402 = vmatpush.xpose.msra.mxu0 0.0
        %403 = vmatpush.xpose.msra.mxu0 0.0
        %404 = vmatpush.xpose.msra.mxu0 0.0
        %405 = vmatpush.xpose.msra.mxu0 0.0
        %406 = vmatpush.xpose.msra.mxu0 0.0
        %407 = vmatpush.xpose.msra.mxu0 0.0
        %408 = vmatpush.xpose.msra.mxu0 0.0
        %409 = vmatpush.xpose.msra.mxu0 0.0
        %410 = vmatpush.xpose.msra.mxu0 %v393
        %411 = vmatmul.f32.gmra.mxu0 %v391
        %v412 = vpop.f32.mrf.mxu0
        %v413 = vadd.f32 0.0, %v412
        %414 = vdwg.mxu0
        %v415 = vsel %vm311, %v413, -inf
        %416 = vmax.xlane.f32.xlu0 %v415
        %v417 = vpop.xlane.xlu0 %416
        %v418 = vsub.f32 %v413, %v417
        %v419 = vmul.f32 %v418, 1.442695
        %v420 = vpow.pop %v419
        %v421 = vsel %vm311, %v420, 0.0
        %422 = vadd.xlane.f32.xlu0 %v421
        %v423 = vpop.xlane.xlu0 %422
        %424 = vrot.lane.b32.xlu0 %v306, 56
        %v425 = vpop.permute.xlu0 %424
        %v428 = vsel %vm311, %v420, 0
        %430 = vmatpush.msra.mxu0 0.0
        %431 = vmatpush.msra.mxu0 0.0
        %432 = vmatpush.msra.mxu0 0.0
        %433 = vmatpush.msra.mxu0 0.0
        %434 = vmatpush.msra.mxu0 0.0
        %435 = vmatpush.msra.mxu0 0.0
        %436 = vmatpush.msra.mxu0 0.0
        %437 = vmatpush.msra.mxu0 0.0
        %438 = vmatpush.msra.mxu0 0.0
        %439 = vmatpush.msra.mxu0 0.0
        %440 = vmatpush.msra.mxu0 0.0
        %441 = vmatpush.msra.mxu0 0.0
        %442 = vmatpush.msra.mxu0 0.0
        %443 = vmatpush.msra.mxu0 0.0
        %444 = vmatpush.msra.mxu0 0.0
        %445 = vmatpush.msra.mxu0 %v425
        %446 = vmatmul.f32.gmra.mxu0 %v428
        %v447 = vpop.f32.mrf.mxu0
        %v448 = vadd.f32 0.0, %v447
        %449 = vdwg.mxu0
        %v450 = vrcp.pop %v423
        %v451 = vmul.f32 %v423, %v450
        %v452 = vsub.f32 1.0, %v451
        %v453 = vmul.f32 %v450, %v452
        %v454 = vadd.f32 %v450, %v453
        %vm455 = vweird.f32 %v423
        %vm456 = vweird.f32 %v450
        %vm457 = vmor %vm455, %vm456
        %v458 = vsel %vm457, %v450, %v454
        %v459 = vand.u32 2147483647, %v423
        %vm460 = vcmp.eq.f32.partialorder %v459, 8.507059e+37
        %v461 = vand.u32 %v423, 2147483648
        %v462 = vor.u32 1.1754944e-38, %v461
        %v463 = vsel %vm460, %v462, %v458
        %v464 = vmul.f32 %v448, %v463
        %466 = vrot.lane.b32.xlu0 %v464, 8
        %v467 = vpop.permute.xlu0 %466
        %vm469 = vcmask 130112
        %470 = vst.msk [vmem:[#allocation2] sm:$0xff] %vm469, %v467
        %471 = vrot.lane.b32.xlu0 %v306, 112
        %v472 = vpop.permute.xlu0 %471
        %473 = vrot.lane.b32.xlu0 %v306, 80
        %v474 = vpop.permute.xlu0 %473
        %v475 = vsel %vm311, %v472, 0
        %v477 = vsel %vm311, %v474, 0
        %479 = vmatpush.xpose.msra.mxu0 0.0
        %480 = vmatpush.xpose.msra.mxu0 0.0
        %481 = vmatpush.xpose.msra.mxu0 0.0
        %482 = vmatpush.xpose.msra.mxu0 0.0
        %483 = vmatpush.xpose.msra.mxu0 0.0
        %484 = vmatpush.xpose.msra.mxu0 0.0
        %485 = vmatpush.xpose.msra.mxu0 0.0
        %486 = vmatpush.xpose.msra.mxu0 0.0
        %487 = vmatpush.xpose.msra.mxu0 0.0
        %488 = vmatpush.xpose.msra.mxu0 0.0
        %489 = vmatpush.xpose.msra.mxu0 0.0
        %490 = vmatpush.xpose.msra.mxu0 0.0
        %491 = vmatpush.xpose.msra.mxu0 0.0
        %492 = vmatpush.xpose.msra.mxu0 0.0
        %493 = vmatpush.xpose.msra.mxu0 0.0
        %494 = vmatpush.xpose.msra.mxu0 %v477
        %495 = vmatmul.f32.gmra.mxu0 %v475
        %v496 = vpop.f32.mrf.mxu0
        %v497 = vadd.f32 0.0, %v496
        %498 = vdwg.mxu0
        %v499 = vsel %vm311, %v497, -inf
        %500 = vmax.xlane.f32.xlu0 %v499
        %v501 = vpop.xlane.xlu0 %500
        %v502 = vsub.f32 %v497, %v501
        %v503 = vmul.f32 %v502, 1.442695
        %v504 = vpow.pop %v503
        %v505 = vsel %vm311, %v504, 0.0
        %506 = vadd.xlane.f32.xlu0 %v505
        %v507 = vpop.xlane.xlu0 %506
        %508 = vrot.lane.b32.xlu0 %v306, 48
        %v509 = vpop.permute.xlu0 %508
        %v512 = vsel %vm311, %v504, 0
        %514 = vmatpush.msra.mxu0 0.0
        %515 = vmatpush.msra.mxu0 0.0
        %516 = vmatpush.msra.mxu0 0.0
        %517 = vmatpush.msra.mxu0 0.0
        %518 = vmatpush.msra.mxu0 0.0
        %519 = vmatpush.msra.mxu0 0.0
        %520 = vmatpush.msra.mxu0 0.0
        %521 = vmatpush.msra.mxu0 0.0
        %522 = vmatpush.msra.mxu0 0.0
        %523 = vmatpush.msra.mxu0 0.0
        %524 = vmatpush.msra.mxu0 0.0
        %525 = vmatpush.msra.mxu0 0.0
        %526 = vmatpush.msra.mxu0 0.0
        %527 = vmatpush.msra.mxu0 0.0
        %528 = vmatpush.msra.mxu0 0.0
        %529 = vmatpush.msra.mxu0 %v509
        %530 = vmatmul.f32.gmra.mxu0 %v512
        %v531 = vpop.f32.mrf.mxu0
        %v532 = vadd.f32 0.0, %v531
        %533 = vdwg.mxu0
        %v534 = vrcp.pop %v507
        %v535 = vmul.f32 %v507, %v534
        %v536 = vsub.f32 1.0, %v535
        %v537 = vmul.f32 %v534, %v536
        %v538 = vadd.f32 %v534, %v537
        %vm539 = vweird.f32 %v507
        %vm540 = vweird.f32 %v534
        %vm541 = vmor %vm539, %vm540
        %v542 = vsel %vm541, %v534, %v538
        %v543 = vand.u32 2147483647, %v507
        %vm544 = vcmp.eq.f32.partialorder %v543, 8.507059e+37
        %v545 = vand.u32 %v507, 2147483648
        %v546 = vor.u32 1.1754944e-38, %v545
        %v547 = vsel %vm544, %v546, %v542
        %v548 = vmul.f32 %v532, %v547
        %550 = vrot.lane.b32.xlu0 %v548, 16
        %v551 = vpop.permute.xlu0 %550
        %vm553 = vcmask 195712
        %554 = vst.msk [vmem:[#allocation2] sm:$0xff] %vm553, %v551
        %555 = vrot.lane.b32.xlu0 %v306, 104
        %v556 = vpop.permute.xlu0 %555
        %557 = vrot.lane.b32.xlu0 %v306, 72
        %v558 = vpop.permute.xlu0 %557
        %v559 = vsel %vm311, %v556, 0
        %v561 = vsel %vm311, %v558, 0
        %563 = vmatpush.xpose.msra.mxu0 0.0
        %564 = vmatpush.xpose.msra.mxu0 0.0
        %565 = vmatpush.xpose.msra.mxu0 0.0
        %566 = vmatpush.xpose.msra.mxu0 0.0
        %567 = vmatpush.xpose.msra.mxu0 0.0
        %568 = vmatpush.xpose.msra.mxu0 0.0
        %569 = vmatpush.xpose.msra.mxu0 0.0
        %570 = vmatpush.xpose.msra.mxu0 0.0
        %571 = vmatpush.xpose.msra.mxu0 0.0
        %572 = vmatpush.xpose.msra.mxu0 0.0
        %573 = vmatpush.xpose.msra.mxu0 0.0
        %574 = vmatpush.xpose.msra.mxu0 0.0
        %575 = vmatpush.xpose.msra.mxu0 0.0
        %576 = vmatpush.xpose.msra.mxu0 0.0
        %577 = vmatpush.xpose.msra.mxu0 0.0
        %578 = vmatpush.xpose.msra.mxu0 %v561
        %579 = vmatmul.f32.gmra.mxu0 %v559
        %v580 = vpop.f32.mrf.mxu0
        %v581 = vadd.f32 0.0, %v580
        %582 = vdwg.mxu0
        %v583 = vsel %vm311, %v581, -inf
        %584 = vmax.xlane.f32.xlu0 %v583
        %v585 = vpop.xlane.xlu0 %584
        %v586 = vsub.f32 %v581, %v585
        %v587 = vmul.f32 %v586, 1.442695
        %v588 = vpow.pop %v587
        %v589 = vsel %vm311, %v588, 0.0
        %590 = vadd.xlane.f32.xlu0 %v589
        %v591 = vpop.xlane.xlu0 %590
        %592 = vrot.lane.b32.xlu0 %v306, 40
        %v593 = vpop.permute.xlu0 %592
        %v596 = vsel %vm311, %v588, 0
        %598 = vmatpush.msra.mxu0 0.0
        %599 = vmatpush.msra.mxu0 0.0
        %600 = vmatpush.msra.mxu0 0.0
        %601 = vmatpush.msra.mxu0 0.0
        %602 = vmatpush.msra.mxu0 0.0
        %603 = vmatpush.msra.mxu0 0.0
        %604 = vmatpush.msra.mxu0 0.0
        %605 = vmatpush.msra.mxu0 0.0
        %606 = vmatpush.msra.mxu0 0.0
        %607 = vmatpush.msra.mxu0 0.0
        %608 = vmatpush.msra.mxu0 0.0
        %609 = vmatpush.msra.mxu0 0.0
        %610 = vmatpush.msra.mxu0 0.0
        %611 = vmatpush.msra.mxu0 0.0
        %612 = vmatpush.msra.mxu0 0.0
        %613 = vmatpush.msra.mxu0 %v593
        %614 = vmatmul.f32.gmra.mxu0 %v596
        %v615 = vpop.f32.mrf.mxu0
        %v616 = vadd.f32 0.0, %v615
        %617 = vdwg.mxu0
        %v618 = vrcp.pop %v591
        %v619 = vmul.f32 %v591, %v618
        %v620 = vsub.f32 1.0, %v619
        %v621 = vmul.f32 %v618, %v620
        %v622 = vadd.f32 %v618, %v621
        %vm623 = vweird.f32 %v591
        %vm624 = vweird.f32 %v618
        %vm625 = vmor %vm623, %vm624
        %v626 = vsel %vm625, %v618, %v622
        %v627 = vand.u32 2147483647, %v591
        %vm628 = vcmp.eq.f32.partialorder %v627, 8.507059e+37
        %v629 = vand.u32 %v591, 2147483648
        %v630 = vor.u32 1.1754944e-38, %v629
        %v631 = vsel %vm628, %v630, %v626
        %v632 = vmul.f32 %v616, %v631
        %634 = vrot.lane.b32.xlu0 %v632, 24
        %v635 = vpop.permute.xlu0 %634
        %vm637 = vcmask 261312
        %638 = vst.msk [vmem:[#allocation2] sm:$0xff] %vm637, %v635
        %v639 = vld [vmem:[#allocation2] sm:$0xff]
        %v640 = vld [vmem:[#allocation8] sm:$0xff]
        %v641 = vld [vmem:[#allocation8 + $0x8] sm:$0xff]
        %v642 = vld [vmem:[#allocation8 + $0x10] sm:$0xff]
        %v643 = vld [vmem:[#allocation8 + $0x18] sm:$0xff]
        %v644 = vld [vmem:[%s4] sm:$0x1]
        %v646 = vperm.slane %v644, 0
        %v649 = vsel %vm284, %v639, 0
        %651 = vmatpush.msra.mxu0 0.0
        %652 = vmatpush.msra.mxu0 0.0
        %653 = vmatpush.msra.mxu0 0.0
        %654 = vmatpush.msra.mxu0 0.0
        %655 = vmatpush.msra.mxu0 0.0
        %656 = vmatpush.msra.mxu0 0.0
        %657 = vmatpush.msra.mxu0 0.0
        %658 = vmatpush.msra.mxu0 0.0
        %659 = vmatpush.msra.mxu0 0.0
        %660 = vmatpush.msra.mxu0 0.0
        %661 = vmatpush.msra.mxu0 0.0
        %662 = vmatpush.msra.mxu0 0.0
        %663 = vmatpush.msra.mxu0 %v643
        %664 = vmatpush.msra.mxu0 %v642
        %665 = vmatpush.msra.mxu0 %v641
        %666 = vmatpush.msra.mxu0 %v640
        %667 = vmatmul.f32.gmra.mxu0 %v649
        %v668 = vpop.f32.mrf.mxu0
        %v669 = vadd.f32 %v646, %v668
        %670 = vdwg.mxu0
        %671 = vst.msk [vmem:[%s274] sm:$0xff] %vm284, %v669
        %s672 = sand.u32 %s141, 1
        %s673 = scalar_lea.sflag [#allocation5], %s672
        %s674 = sand.u32 %s141, 1
        %s675 = smul.addr %s674, 8
        %s676 = scalar_lea.vmem [#allocation9], %s675
        // Predicated region
        $region53: #{multi_head_attention.1} parent=39 // pred_check
          %p677 = pneg %p151
        $region54: #{multi_head_attention.1} parent=39 // pred_check_branch
          %679 = sbr.rel (%p677) target = $region56
        $region55: #{multi_head_attention.1} parent=39 // pred_region
          %681 = vsyncadd %s673, 0
          %s682 = smul.addr %s23, 8
          %s683 = scalar_lea.hbm %s5, %s682
          %s685 = sshll.u32 %s676, 4
          %s686 = int_to_ptr.vmem [resolvable:$true] %s685
          %s687 = sshll.u32 %s683, 4
          %s688 = int_to_ptr.hbm [resolvable:$true] %s687
          %690 = dma.vmem_to_hbm [thread:$0]  %s686, 128, %s688, %s673
        $region56: #{multi_head_attention.1} parent=39 // pred_fallthru
          _
      $region40: #{multi_head_attention.1} parent=5 // pred_fallthru
        _
      %p691 = scmp.le.s32.totalorder 2, %s18
      // Predicated region
      $region57: #{multi_head_attention.1} parent=5 // pred_check
        %p692 = pneg %p691
      $region58: #{multi_head_attention.1} parent=5 // pred_check_branch
        %694 = sbr.rel (%p692) target = $region60
      $region59: #{multi_head_attention.1} parent=5 // pred_region
        %s695 = ssub.s32 %s18, 2
        // Predicated region
        $region61: #{multi_head_attention.1} parent=59 // pred_check
          %p696 = pneg %p157
        $region62: #{multi_head_attention.1} parent=59 // pred_check_branch
          %698 = sbr.rel (%p696) target = $region64
        $region63: #{multi_head_attention.1} parent=59 // pred_region
          %s699 = sand.u32 %s142, 1
          %s700 = scalar_lea.sflag [#allocation5], %s699
          %s701 = sand.u32 %s142, 1
          %s702 = smul.addr %s701, 8
          %s703 = scalar_lea.vmem [#allocation9], %s702
          %705 = dma.done %s700, 128
        $region64: #{multi_head_attention.1} parent=59 // pred_fallthru
          _
      $region60: #{multi_head_attention.1} parent=5 // pred_fallthru
        _
    $region6: #{multi_head_attention.1} parent=1 // loop_footer
      %s22 = sadd.s32 1, %s18
    $region7: #{multi_head_attention.1} parent=1 // loop_footer_branch
      %17 = sbr.rel target = $region3
    $region8: #{multi_head_attention.1} parent=1 // loop_exit
      _
    %706 = vsyncpa [#allocation4], 1
    %s707 = scalar_lea.sflag [#allocation4], 1
    %708 = vsyncpa %s707, 1
    %709 = vsyncpa [#allocation7], 1
    %710 = vsyncpa [#allocation5], 1
    %s711 = scalar_lea.sflag [#allocation5], 1
    %712 = vsyncpa %s711, 1

</llo_original>
